<compile_context>
chip_gen: v7x
topology: tpu7x:2x2x1
jax: 0.10.0
libtpu: 0.0.40
codegen_flags: <defaults>
</compile_context>

<pallas_src>
import functools

import jax
import jax.numpy as jnp
from jax.experimental import pallas as pl
from jax.experimental.pallas import tpu as pltpu

_LANE = 128
_SUBLANE = 8
# Conservative working-set target; leaves ample headroom on v7x (64 MiB VMEM).
_VMEM_BUDGET_BYTES = 24 * 1024 * 1024
_VMEM_LIMIT_BYTES = 48 * 1024 * 1024


def _round_up(v, m):
    return (v + m - 1) // m * m


# ----------------------------- kernel bodies ------------------------------ #

def _resnet_block_kernel_shortcut(x_ref, w0_ref, b0_ref, w1_ref, b1_ref,
                                  ws_ref, o_ref):
    x = x_ref[...]
    h = jnp.maximum(x, 0.0)                                        # relu(x)
    net = jnp.dot(h, w0_ref[...],
                  preferred_element_type=jnp.float32) + b0_ref[...]
    net = jnp.maximum(net, 0.0)        # overwrite: keep live tiles minimal
    dx = jnp.dot(net, w1_ref[...],
                 preferred_element_type=jnp.float32) + b1_ref[...]
    x_s = jnp.dot(x, ws_ref[...], preferred_element_type=jnp.float32)
    o_ref[...] = (x_s + dx).astype(o_ref.dtype)


def _resnet_block_kernel_identity(x_ref, w0_ref, b0_ref, w1_ref, b1_ref,
                                  o_ref):
    x = x_ref[...]
    h = jnp.maximum(x, 0.0)
    net = jnp.dot(h, w0_ref[...],
                  preferred_element_type=jnp.float32) + b0_ref[...]
    net = jnp.maximum(net, 0.0)
    dx = jnp.dot(net, w1_ref[...],
                 preferred_element_type=jnp.float32) + b1_ref[...]
    o_ref[...] = (x + dx).astype(o_ref.dtype)


# ------------------------------- wrapper ----------------------------------- #

def _pick_tile_m(n, cin, ch, cout, itemsize):
    """Largest row tile (multiple of 8, <=1024) whose working set fits budget."""
    # Resident weights + biases (single-buffered).
    fixed = (cin * ch + ch * cout + cin * cout + ch + cout) * itemsize
    # Per-row bytes: double-buffered x/out tiles + live f32 intermediates.
    per_row = (2 * cin + 2 * cout + cin + ch + cout) * itemsize
    tile = (_VMEM_BUDGET_BYTES - fixed) // max(per_row, 1)
    tile = min(tile, 1024, _round_up(n, _SUBLANE))
    tile = max(_SUBLANE, (tile // _SUBLANE) * _SUBLANE)
    return int(tile)


@functools.partial(jax.jit, static_argnames=("has_shortcut",))
def resnet_block_fc(x, params, has_shortcut):
    n, size_in = x.shape
    w0, b0, w1, b1 = params["w0"], params["b0"], params["w1"], params["b1"]
    size_h = w0.shape[1]
    size_out = w1.shape[1]
    itemsize = 4  # all math in f32

    # Lane-align the feature dims; pick a row tile and pad N to a multiple.
    cin = _round_up(size_in, _LANE)
    ch = _round_up(size_h, _LANE)
    cout = _round_up(size_out, _LANE)
    tile_m = _pick_tile_m(n, cin, ch, cout, itemsize)
    n_p = _round_up(n, tile_m)

    # Zero-pad once outside the kernel. Padded rows/cols are exact zeros, so
    # matmuls / bias adds / residual are unaffected; output is sliced back.
    xp = jnp.pad(x, ((0, n_p - n), (0, cin - size_in)))
    w0p = jnp.pad(w0, ((0, cin - size_in), (0, ch - size_h)))
    b0p = jnp.pad(b0, ((0, 0), (0, ch - size_h)))
    w1p = jnp.pad(w1, ((0, ch - size_h), (0, cout - size_out)))
    b1p = jnp.pad(b1, ((0, 0), (0, cout - size_out)))

    grid = (n_p // tile_m,)

    x_spec = pl.BlockSpec((tile_m, cin), lambda i: (i, 0))
    out_spec = pl.BlockSpec((tile_m, cout), lambda i: (i, 0))
    # Weights / biases: constant index_map -> resident in VMEM, DMA'd once.
    w0_spec = pl.BlockSpec((cin, ch), lambda i: (0, 0))
    b0_spec = pl.BlockSpec((1, ch), lambda i: (0, 0))
    w1_spec = pl.BlockSpec((ch, cout), lambda i: (0, 0))
    b1_spec = pl.BlockSpec((1, cout), lambda i: (0, 0))

    flops = 2 * n_p * (cin * ch + ch * cout)
    bytes_accessed = (n_p * (cin + cout)
                      + cin * ch + ch * cout + ch + cout) * itemsize

    compiler_params = pltpu.CompilerParams(
        dimension_semantics=("parallel",),      # shards rows across TCs on v7x
        vmem_limit_bytes=_VMEM_LIMIT_BYTES,
    )

    out_shape = jax.ShapeDtypeStruct((n_p, cout), x.dtype)

    if has_shortcut:
        ws = params["ws"]
        wsp = jnp.pad(ws, ((0, cin - size_in), (0, cout - size_out)))
        flops += 2 * n_p * cin * cout
        bytes_accessed += cin * cout * itemsize
        out_p = pl.pallas_call(
            _resnet_block_kernel_shortcut,
            out_shape=out_shape,
            grid=grid,
            in_specs=[x_spec, w0_spec, b0_spec, w1_spec, b1_spec,
                      pl.BlockSpec((cin, cout), lambda i: (0, 0))],
            out_specs=out_spec,
            compiler_params=compiler_params,
            cost_estimate=pl.CostEstimate(flops=flops, transcendentals=0,
                                          bytes_accessed=bytes_accessed),
        )(xp, w0p, b0p, w1p, b1p, wsp)
    else:
        out_p = pl.pallas_call(
            _resnet_block_kernel_identity,
            out_shape=out_shape,
            grid=grid,
            in_specs=[x_spec, w0_spec, b0_spec, w1_spec, b1_spec],
            out_specs=out_spec,
            compiler_params=compiler_params,
            cost_estimate=pl.CostEstimate(flops=flops, transcendentals=0,
                                          bytes_accessed=bytes_accessed),
        )(xp, w0p, b0p, w1p, b1p)

    return out_p[:n, :size_out]


# --------------------------- params / reference ---------------------------- #

def init_params(key, size_in, size_out=None, size_h=None, dtype=jnp.float32):
    """Deterministic synthetic init mirroring nn.Linear shapes.

    fc_0: Linear(size_in, size_h)   -> w0 [size_in, size_h], b0 [1, size_h]
    fc_1: Linear(size_h, size_out)  -> weight zero-initialized (per module)
    shortcut: Linear(size_in, size_out, bias=False) iff size_in != size_out
    Weights are stored pre-transposed as [in, out] so the kernel does y=x@W+b.
    """
    if size_out is None:
        size_out = size_in
    if size_h is None:
        size_h = min(size_in, size_out)

    k0, kb0, kb1, ks = jax.random.split(key, 4)
    params = {
        "w0": jax.random.normal(k0, (size_in, size_h), dtype) * 0.1,
        "b0": jax.random.normal(kb0, (1, size_h), dtype) * 0.1,
        # nn.init.zeros_(self.fc_1.weight)
        "w1": jnp.zeros((size_h, size_out), dtype),
        "b1": jax.random.normal(kb1, (1, size_out), dtype) * 0.1,
    }
    has_shortcut = size_in != size_out
    if has_shortcut:
        params["ws"] = jax.random.normal(ks, (size_in, size_out), dtype) * 0.1
    return params, has_shortcut, size_out, size_h


def resnet_block_fc_ref(x, params, has_shortcut):
    """Pure-JAX reference for correctness checking."""
    net = jnp.maximum(x, 0.0) @ params["w0"] + params["b0"]
    dx = jnp.maximum(net, 0.0) @ params["w1"] + params["b1"]
    x_s = x @ params["ws"] if has_shortcut else x
    return x_s + dx


if __name__ == "__main__":
    key = jax.random.PRNGKey(0)
    kx, kp1, kp2 = jax.random.split(key, 3)

    # Case 1: size_in != size_out (uses the shortcut Linear).
    n, size_in, size_out = 8, 32, 48
    x = jax.random.normal(kx, (n, size_in), jnp.float32)
    params, has_sc, _, _ = init_params(kp1, size_in, size_out)
    out = resnet_block_fc(x, params, has_sc)
    out = jax.block_until_ready(out)
    ref = resnet_block_fc_ref(x, params, has_sc)
    assert out.shape == (n, size_out)
    assert jnp.allclose(out, ref, atol=1e-5, rtol=1e-5)

    # Case 2: size_in == size_out (identity shortcut).
    params2, has_sc2, _, _ = init_params(kp2, size_in)
    out2 = resnet_block_fc(x, params2, has_sc2)
    out2 = jax.block_until_ready(out2)
    ref2 = resnet_block_fc_ref(x, params2, has_sc2)
    assert out2.shape == (n, size_in)
    assert jnp.allclose(out2, ref2, atol=1e-5, rtol=1e-5)

    print("KERNEL_OK")
</pallas_src>

<mosaic_0001>
module attributes {stable_mosaic.version = 11 : i64} {
  func.func @_resnet_block_kernel_shortcut(%arg0: i32, %arg1: memref<8x128xf32, #tpu.memory_space<vmem>>, %arg2: memref<128x128xf32, #tpu.memory_space<vmem>>, %arg3: memref<1x128xf32, #tpu.memory_space<vmem>>, %arg4: memref<128x128xf32, #tpu.memory_space<vmem>>, %arg5: memref<1x128xf32, #tpu.memory_space<vmem>>, %arg6: memref<128x128xf32, #tpu.memory_space<vmem>>, %arg7: memref<8x128xf32, #tpu.memory_space<vmem>>) attributes {dimension_semantics = [#tpu.dimension_semantics<parallel>], iteration_bounds = array<i64: 1>, scalar_prefetch = 0 : i64, scratch_operands = 0 : i64, tpu.core_type = #tpu.core_type<tc>, window_params = [{transform_indices = @transform_0, window_bounds = array<i64: 8, 128>}, {pipeline_mode = #tpu.pipeline_mode<synchronous>, transform_indices = @transform_1, window_bounds = array<i64: 128, 128>}, {pipeline_mode = #tpu.pipeline_mode<synchronous>, transform_indices = @transform_2, window_bounds = array<i64: 1, 128>}, {pipeline_mode = #tpu.pipeline_mode<synchronous>, transform_indices = @transform_3, window_bounds = array<i64: 128, 128>}, {pipeline_mode = #tpu.pipeline_mode<synchronous>, transform_indices = @transform_4, window_bounds = array<i64: 1, 128>}, {pipeline_mode = #tpu.pipeline_mode<synchronous>, transform_indices = @transform_5, window_bounds = array<i64: 128, 128>}, {transform_indices = @transform_6, window_bounds = array<i64: 8, 128>}]} {
    %c0 = arith.constant 0 : index
    %c0_0 = arith.constant 0 : index
    %0 = vector.load %arg1[%c0, %c0_0] : memref<8x128xf32, #tpu.memory_space<vmem>>, vector<8x128xf32>
    %cst = arith.constant 0.000000e+00 : f32
    %1 = vector.broadcast %cst : f32 to vector<8x128xf32>
    %2 = arith.maximumf %0, %1 : vector<8x128xf32>
    %c0_1 = arith.constant 0 : index
    %c0_2 = arith.constant 0 : index
    %3 = vector.load %arg2[%c0_1, %c0_2] : memref<128x128xf32, #tpu.memory_space<vmem>>, vector<128x128xf32>
    %cst_3 = arith.constant dense<0.000000e+00> : vector<8x128xf32>
    %4 = tpu.matmul %2, %3, %cst_3 {dimension_numbers = #tpu.dot_dimension_numbers<[1], [0], [0], [1], [0, 0, 1, 1], [], []>} : vector<8x128xf32>, vector<128x128xf32>, vector<8x128xf32> -> vector<8x128xf32>
    %c0_4 = arith.constant 0 : index
    %c0_5 = arith.constant 0 : index
    %5 = vector.load %arg3[%c0_4, %c0_5] : memref<1x128xf32, #tpu.memory_space<vmem>>, vector<1x128xf32>
    %6 = vector.broadcast %5 : vector<1x128xf32> to vector<8x128xf32>
    %7 = arith.addf %4, %6 : vector<8x128xf32>
    %cst_6 = arith.constant 0.000000e+00 : f32
    %8 = vector.broadcast %cst_6 : f32 to vector<8x128xf32>
    %9 = arith.maximumf %7, %8 : vector<8x128xf32>
    %c0_7 = arith.constant 0 : index
    %c0_8 = arith.constant 0 : index
    %10 = vector.load %arg4[%c0_7, %c0_8] : memref<128x128xf32, #tpu.memory_space<vmem>>, vector<128x128xf32>
    %cst_9 = arith.constant dense<0.000000e+00> : vector<8x128xf32>
    %11 = tpu.matmul %9, %10, %cst_9 {dimension_numbers = #tpu.dot_dimension_numbers<[1], [0], [0], [1], [0, 0, 1, 1], [], []>} : vector<8x128xf32>, vector<128x128xf32>, vector<8x128xf32> -> vector<8x128xf32>
    %c0_10 = arith.constant 0 : index
    %c0_11 = arith.constant 0 : index
    %12 = vector.load %arg5[%c0_10, %c0_11] : memref<1x128xf32, #tpu.memory_space<vmem>>, vector<1x128xf32>
    %13 = vector.broadcast %12 : vector<1x128xf32> to vector<8x128xf32>
    %14 = arith.addf %11, %13 : vector<8x128xf32>
    %c0_12 = arith.constant 0 : index
    %c0_13 = arith.constant 0 : index
    %15 = vector.load %arg6[%c0_12, %c0_13] : memref<128x128xf32, #tpu.memory_space<vmem>>, vector<128x128xf32>
    %cst_14 = arith.constant dense<0.000000e+00> : vector<8x128xf32>
    %16 = tpu.matmul %0, %15, %cst_14 {dimension_numbers = #tpu.dot_dimension_numbers<[1], [0], [0], [1], [0, 0, 1, 1], [], []>} : vector<8x128xf32>, vector<128x128xf32>, vector<8x128xf32> -> vector<8x128xf32>
    %17 = arith.addf %16, %14 : vector<8x128xf32>
    %c0_15 = arith.constant 0 : index
    %c0_16 = arith.constant 0 : index
    %18 = vector.load %arg7[%c0_15, %c0_16] : memref<8x128xf32, #tpu.memory_space<vmem>>, vector<8x128xf32>
    tpu.vector_store %arg7[%c0_15, %c0_16], %17 {strides = array<i32>} : memref<8x128xf32, #tpu.memory_space<vmem>>, vector<8x128xf32>,
    return
  }
  func.func @transform_0(%arg0: i32) -> (i32, i32) {
    %c0_i32 = arith.constant 0 : i32
    %c0_i32_0 = arith.constant 0 : i32
    return %arg0, %c0_i32 : i32, i32
  }
  func.func @transform_1(%arg0: i32) -> (i32, i32) {
    %c0_i32 = arith.constant 0 : i32
    %c0_i32_0 = arith.constant 0 : i32
    %c0_i32_1 = arith.constant 0 : i32
    return %c0_i32, %c0_i32_0 : i32, i32
  }
  func.func @transform_2(%arg0: i32) -> (i32, i32) {
    %c0_i32 = arith.constant 0 : i32
    %c0_i32_0 = arith.constant 0 : i32
    %c0_i32_1 = arith.constant 0 : i32
    return %c0_i32, %c0_i32_0 : i32, i32
  }
  func.func @transform_3(%arg0: i32) -> (i32, i32) {
    %c0_i32 = arith.constant 0 : i32
    %c0_i32_0 = arith.constant 0 : i32
    %c0_i32_1 = arith.constant 0 : i32
    return %c0_i32, %c0_i32_0 : i32, i32
  }
  func.func @transform_4(%arg0: i32) -> (i32, i32) {
    %c0_i32 = arith.constant 0 : i32
    %c0_i32_0 = arith.constant 0 : i32
    %c0_i32_1 = arith.constant 0 : i32
    return %c0_i32, %c0_i32_0 : i32, i32
  }
  func.func @transform_5(%arg0: i32) -> (i32, i32) {
    %c0_i32 = arith.constant 0 : i32
    %c0_i32_0 = arith.constant 0 : i32
    %c0_i32_1 = arith.constant 0 : i32
    return %c0_i32, %c0_i32_0 : i32, i32
  }
  func.func @transform_6(%arg0: i32) -> (i32, i32) {
    %c0_i32 = arith.constant 0 : i32
    %c0_i32_0 = arith.constant 0 : i32
    return %arg0, %c0_i32 : i32, i32
  }
}

</mosaic_0001>

<llo_original>
// kernel: resnet_block_fc.1
$region0: #{resnet_block_fc.1}
  #allocation0 [shape = 'u32[]', space=smem, size = 0x4, offset = 0x4, fixed_abs, tag = 'smem constant byte address 0x4 - core index']
  #allocation1 [shape = 'u32[144,128]{1,0:T(1,128)}', space=vmem, size = 0x12000, scoped, tag = 'internal scratch']
  %s0 = inlined_call_operand.vmem [shape: f32[8,128], index: 0, kind: input, shape index: {}]
  %s1 = inlined_call_operand.vmem [shape: f32[128,128], index: 1, kind: input, shape index: {}]
  %s2 = inlined_call_operand.vmem [shape: f32[1,128], index: 2, kind: input, shape index: {}]
  %s3 = inlined_call_operand.vmem [shape: f32[128,128], index: 3, kind: input, shape index: {}]
  %s4 = inlined_call_operand.vmem [shape: f32[1,128], index: 4, kind: input, shape index: {}]
  %s5 = inlined_call_operand.vmem [shape: f32[128,128], index: 5, kind: input, shape index: {}]
  %s6 = inlined_call_operand.hbm [shape: f32[8,128], index: 6, kind: output, shape index: {}]
  %s7 = sld [smem:[#allocation0]]
  $region34: #{resnet_block_fc.1} parent=0
    _
  %s9 = ssub.s32 1, %s7
  %s10 = scalar_select 0, %s9, %s7
  $region1: #{resnet_block_fc.1} parent=0
    #allocation2 [shape = 'u8[4096]{0}', space=vmem, size = 0x1000, scoped, tag = 'output window, operand 0, single buffered']
    #allocation3 [shape = 's32[1]{0}', space=sflag, size = 0x4, scoped, tag = 'scoped memory for resnet_block_fc.1']
    %11 = vsyncpa [#allocation3], 0
    // Predicated region
    $region2: #{resnet_block_fc.1} parent=1 // pred_check
      _
    $region3: #{resnet_block_fc.1} parent=1 // pred_check_branch
      %13 = sbr.rel (0) target = $region5
    $region4: #{resnet_block_fc.1} parent=1 // pred_region
      _
    $region5: #{resnet_block_fc.1} parent=1 // pred_fallthru
      _
    // Predicated region
    $region6: #{resnet_block_fc.1} parent=1 // pred_check
      _
    $region7: #{resnet_block_fc.1} parent=1 // pred_check_branch
      %15 = sbr.rel (0) target = $region9
    $region8: #{resnet_block_fc.1} parent=1 // pred_region
      _
    $region9: #{resnet_block_fc.1} parent=1 // pred_fallthru
      _
    // Predicated region
    $region10: #{resnet_block_fc.1} parent=1 // pred_check
      _
    $region11: #{resnet_block_fc.1} parent=1 // pred_check_branch
      %17 = sbr.rel (0) target = $region13
    $region12: #{resnet_block_fc.1} parent=1 // pred_region
      _
    $region13: #{resnet_block_fc.1} parent=1 // pred_fallthru
      _
    // Predicated region
    $region14: #{resnet_block_fc.1} parent=1 // pred_check
      _
    $region15: #{resnet_block_fc.1} parent=1 // pred_check_branch
      %19 = sbr.rel (0) target = $region17
    $region16: #{resnet_block_fc.1} parent=1 // pred_region
      _
    $region17: #{resnet_block_fc.1} parent=1 // pred_fallthru
      _
    // Predicated region
    $region18: #{resnet_block_fc.1} parent=1 // pred_check
      _
    $region19: #{resnet_block_fc.1} parent=1 // pred_check_branch
      %21 = sbr.rel (0) target = $region21
    $region20: #{resnet_block_fc.1} parent=1 // pred_region
      _
    $region21: #{resnet_block_fc.1} parent=1 // pred_fallthru
      _
    // Predicated region
    $region22: #{resnet_block_fc.1} parent=1 // pred_check
      _
    $region23: #{resnet_block_fc.1} parent=1 // pred_check_branch
      %23 = sbr.rel (0) target = $region25
    $region24: #{resnet_block_fc.1} parent=1 // pred_region
      _
    $region25: #{resnet_block_fc.1} parent=1 // pred_fallthru
      _
    %v24 = vld [vmem:[%s0] sm:$0xff]
    %v25 = vmax.f32 %v24, 0.0
    %v26 = vld [vmem:[%s1] sm:$0xff]
    %v27 = vld [vmem:[%s1 + $0x8] sm:$0xff]
    %v28 = vld [vmem:[%s1 + $0x10] sm:$0xff]
    %v29 = vld [vmem:[%s1 + $0x18] sm:$0xff]
    %v30 = vld [vmem:[%s1 + $0x20] sm:$0xff]
    %v31 = vld [vmem:[%s1 + $0x28] sm:$0xff]
    %v32 = vld [vmem:[%s1 + $0x30] sm:$0xff]
    %v33 = vld [vmem:[%s1 + $0x38] sm:$0xff]
    %v34 = vld [vmem:[%s1 + $0x40] sm:$0xff]
    %v35 = vld [vmem:[%s1 + $0x48] sm:$0xff]
    %v36 = vld [vmem:[%s1 + $0x50] sm:$0xff]
    %v37 = vld [vmem:[%s1 + $0x58] sm:$0xff]
    %v38 = vld [vmem:[%s1 + $0x60] sm:$0xff]
    %v39 = vld [vmem:[%s1 + $0x68] sm:$0xff]
    %v40 = vld [vmem:[%s1 + $0x70] sm:$0xff]
    %v41 = vld [vmem:[%s1 + $0x78] sm:$0xff]
    %v42 = vld [vmem:[%s2] sm:$0x1]
    %v44 = vlaneseq
    %v45 = vshrl.u32 %v44, 7
    %v46 = vsub.s32 0, %v45
    %v47 = vrot.slane %v42, %v46
    %49 = vmatprep.subr.mxu0 0.0
    %50 = vmatpush1.msra.mxu0 %v26
    %51 = vmatprep.subr.mxu0 0.0
    %52 = vmatpush1.msra.mxu0 %v27
    %53 = vmatprep.subr.mxu0 0.0
    %54 = vmatpush1.msra.mxu0 %v28
    %55 = vmatprep.subr.mxu0 0.0
    %56 = vmatpush1.msra.mxu0 %v29
    %57 = vmatprep.subr.mxu0 0.0
    %58 = vmatpush1.msra.mxu0 %v30
    %59 = vmatprep.subr.mxu0 0.0
    %60 = vmatpush1.msra.mxu0 %v31
    %61 = vmatprep.subr.mxu0 0.0
    %62 = vmatpush1.msra.mxu0 %v32
    %63 = vmatprep.subr.mxu0 0.0
    %64 = vmatpush1.msra.mxu0 %v33
    %65 = vmatprep.subr.mxu0 0.0
    %66 = vmatpush1.msra.mxu0 %v34
    %67 = vmatprep.subr.mxu0 0.0
    %68 = vmatpush1.msra.mxu0 %v35
    %69 = vmatprep.subr.mxu0 0.0
    %70 = vmatpush1.msra.mxu0 %v36
    %71 = vmatprep.subr.mxu0 0.0
    %72 = vmatpush1.msra.mxu0 %v37
    %73 = vmatprep.subr.mxu0 0.0
    %74 = vmatpush1.msra.mxu0 %v38
    %75 = vmatprep.subr.mxu0 0.0
    %76 = vmatpush1.msra.mxu0 %v39
    %77 = vmatprep.subr.mxu0 0.0
    %78 = vmatpush1.msra.mxu0 %v40
    %79 = vmatprep.subr.mxu0 0.0
    %80 = vmatpush1.msra.mxu0 %v41
    %81 = vmatprep.subr.mxu0 0.0
    %82 = vmatpush1.msra.mxu0 0.0
    %83 = vmatprep.subr.mxu0 0.0
    %84 = vmatpush1.msra.mxu0 0.0
    %85 = vmatprep.subr.mxu0 0.0
    %86 = vmatpush1.msra.mxu0 0.0
    %87 = vmatprep.subr.mxu0 0.0
    %88 = vmatpush1.msra.mxu0 0.0
    %89 = vmatprep.subr.mxu0 0.0
    %90 = vmatpush1.msra.mxu0 0.0
    %91 = vmatprep.subr.mxu0 0.0
    %92 = vmatpush1.msra.mxu0 0.0
    %93 = vmatprep.subr.mxu0 0.0
    %94 = vmatpush1.msra.mxu0 0.0
    %95 = vmatprep.subr.mxu0 0.0
    %96 = vmatpush1.msra.mxu0 0.0
    %97 = vmatprep.subr.mxu0 0.0
    %98 = vmatpush1.msra.mxu0 0.0
    %99 = vmatprep.subr.mxu0 0.0
    %100 = vmatpush1.msra.mxu0 0.0
    %101 = vmatprep.subr.mxu0 0.0
    %102 = vmatpush1.msra.mxu0 0.0
    %103 = vmatprep.subr.mxu0 0.0
    %104 = vmatpush1.msra.mxu0 0.0
    %105 = vmatprep.subr.mxu0 0.0
    %106 = vmatpush1.msra.mxu0 0.0
    %107 = vmatprep.subr.mxu0 0.0
    %108 = vmatpush1.msra.mxu0 0.0
    %109 = vmatprep.subr.mxu0 0.0
    %110 = vmatpush1.msra.mxu0 0.0
    %111 = vmatprep.subr.mxu0 0.0
    %112 = vmatpush1.msra.mxu0 0.0
    %113 = vmatprep.mubr.f32.mxu0 0.0
    %114 = vmatmul.mubr.f32.gmra.mrb[0].mxu0 %v25
    %v115 = vpop.f32.mrb[0].mxu0
    %v116 = vadd.f32 %v47, %v115
    %v117 = vpop.f32.mrb[0].mxu0
    %118 = vdwg.mxu0
    %v119 = vmax.f32 %v116, 0.0
    %v120 = vld [vmem:[%s3] sm:$0xff]
    %v121 = vld [vmem:[%s3 + $0x8] sm:$0xff]
    %v122 = vld [vmem:[%s3 + $0x10] sm:$0xff]
    %v123 = vld [vmem:[%s3 + $0x18] sm:$0xff]
    %v124 = vld [vmem:[%s3 + $0x20] sm:$0xff]
    %v125 = vld [vmem:[%s3 + $0x28] sm:$0xff]
    %v126 = vld [vmem:[%s3 + $0x30] sm:$0xff]
    %v127 = vld [vmem:[%s3 + $0x38] sm:$0xff]
    %v128 = vld [vmem:[%s3 + $0x40] sm:$0xff]
    %v129 = vld [vmem:[%s3 + $0x48] sm:$0xff]
    %v130 = vld [vmem:[%s3 + $0x50] sm:$0xff]
    %v131 = vld [vmem:[%s3 + $0x58] sm:$0xff]
    %v132 = vld [vmem:[%s3 + $0x60] sm:$0xff]
    %v133 = vld [vmem:[%s3 + $0x68] sm:$0xff]
    %v134 = vld [vmem:[%s3 + $0x70] sm:$0xff]
    %v135 = vld [vmem:[%s3 + $0x78] sm:$0xff]
    %v136 = vld [vmem:[%s4] sm:$0x1]
    %v138 = vlaneseq
    %v139 = vshrl.u32 %v138, 7
    %v140 = vsub.s32 0, %v139
    %v141 = vrot.slane %v136, %v140
    %143 = vmatprep.subr.mxu0 0.0
    %144 = vmatpush1.msra.mxu0 %v120
    %145 = vmatprep.subr.mxu0 0.0
    %146 = vmatpush1.msra.mxu0 %v121
    %147 = vmatprep.subr.mxu0 0.0
    %148 = vmatpush1.msra.mxu0 %v122
    %149 = vmatprep.subr.mxu0 0.0
    %150 = vmatpush1.msra.mxu0 %v123
    %151 = vmatprep.subr.mxu0 0.0
    %152 = vmatpush1.msra.mxu0 %v124
    %153 = vmatprep.subr.mxu0 0.0
    %154 = vmatpush1.msra.mxu0 %v125
    %155 = vmatprep.subr.mxu0 0.0
    %156 = vmatpush1.msra.mxu0 %v126
    %157 = vmatprep.subr.mxu0 0.0
    %158 = vmatpush1.msra.mxu0 %v127
    %159 = vmatprep.subr.mxu0 0.0
    %160 = vmatpush1.msra.mxu0 %v128
    %161 = vmatprep.subr.mxu0 0.0
    %162 = vmatpush1.msra.mxu0 %v129
    %163 = vmatprep.subr.mxu0 0.0
    %164 = vmatpush1.msra.mxu0 %v130
    %165 = vmatprep.subr.mxu0 0.0
    %166 = vmatpush1.msra.mxu0 %v131
    %167 = vmatprep.subr.mxu0 0.0
    %168 = vmatpush1.msra.mxu0 %v132
    %169 = vmatprep.subr.mxu0 0.0
    %170 = vmatpush1.msra.mxu0 %v133
    %171 = vmatprep.subr.mxu0 0.0
    %172 = vmatpush1.msra.mxu0 %v134
    %173 = vmatprep.subr.mxu0 0.0
    %174 = vmatpush1.msra.mxu0 %v135
    %175 = vmatprep.subr.mxu0 0.0
    %176 = vmatpush1.msra.mxu0 0.0
    %177 = vmatprep.subr.mxu0 0.0
    %178 = vmatpush1.msra.mxu0 0.0
    %179 = vmatprep.subr.mxu0 0.0
    %180 = vmatpush1.msra.mxu0 0.0
    %181 = vmatprep.subr.mxu0 0.0
    %182 = vmatpush1.msra.mxu0 0.0
    %183 = vmatprep.subr.mxu0 0.0
    %184 = vmatpush1.msra.mxu0 0.0
    %185 = vmatprep.subr.mxu0 0.0
    %186 = vmatpush1.msra.mxu0 0.0
    %187 = vmatprep.subr.mxu0 0.0
    %188 = vmatpush1.msra.mxu0 0.0
    %189 = vmatprep.subr.mxu0 0.0
    %190 = vmatpush1.msra.mxu0 0.0
    %191 = vmatprep.subr.mxu0 0.0
    %192 = vmatpush1.msra.mxu0 0.0
    %193 = vmatprep.subr.mxu0 0.0
    %194 = vmatpush1.msra.mxu0 0.0
    %195 = vmatprep.subr.mxu0 0.0
    %196 = vmatpush1.msra.mxu0 0.0
    %197 = vmatprep.subr.mxu0 0.0
    %198 = vmatpush1.msra.mxu0 0.0
    %199 = vmatprep.subr.mxu0 0.0
    %200 = vmatpush1.msra.mxu0 0.0
    %201 = vmatprep.subr.mxu0 0.0
    %202 = vmatpush1.msra.mxu0 0.0
    %203 = vmatprep.subr.mxu0 0.0
    %204 = vmatpush1.msra.mxu0 0.0
    %205 = vmatprep.subr.mxu0 0.0
    %206 = vmatpush1.msra.mxu0 0.0
    %207 = vmatprep.mubr.f32.mxu0 0.0
    %208 = vmatmul.mubr.f32.gmra.mrb[0].mxu0 %v119
    %v209 = vpop.f32.mrb[0].mxu0
    %v210 = vadd.f32 %v141, %v209
    %v211 = vpop.f32.mrb[0].mxu0
    %212 = vdwg.mxu0
    %v213 = vld [vmem:[%s5] sm:$0xff]
    %v214 = vld [vmem:[%s5 + $0x8] sm:$0xff]
    %v215 = vld [vmem:[%s5 + $0x10] sm:$0xff]
    %v216 = vld [vmem:[%s5 + $0x18] sm:$0xff]
    %v217 = vld [vmem:[%s5 + $0x20] sm:$0xff]
    %v218 = vld [vmem:[%s5 + $0x28] sm:$0xff]
    %v219 = vld [vmem:[%s5 + $0x30] sm:$0xff]
    %v220 = vld [vmem:[%s5 + $0x38] sm:$0xff]
    %v221 = vld [vmem:[%s5 + $0x40] sm:$0xff]
    %v222 = vld [vmem:[%s5 + $0x48] sm:$0xff]
    %v223 = vld [vmem:[%s5 + $0x50] sm:$0xff]
    %v224 = vld [vmem:[%s5 + $0x58] sm:$0xff]
    %v225 = vld [vmem:[%s5 + $0x60] sm:$0xff]
    %v226 = vld [vmem:[%s5 + $0x68] sm:$0xff]
    %v227 = vld [vmem:[%s5 + $0x70] sm:$0xff]
    %v228 = vld [vmem:[%s5 + $0x78] sm:$0xff]
    %229 = vmatprep.subr.mxu0 0.0
    %230 = vmatpush1.msra.mxu0 %v213
    %231 = vmatprep.subr.mxu0 0.0
    %232 = vmatpush1.msra.mxu0 %v214
    %233 = vmatprep.subr.mxu0 0.0
    %234 = vmatpush1.msra.mxu0 %v215
    %235 = vmatprep.subr.mxu0 0.0
    %236 = vmatpush1.msra.mxu0 %v216
    %237 = vmatprep.subr.mxu0 0.0
    %238 = vmatpush1.msra.mxu0 %v217
    %239 = vmatprep.subr.mxu0 0.0
    %240 = vmatpush1.msra.mxu0 %v218
    %241 = vmatprep.subr.mxu0 0.0
    %242 = vmatpush1.msra.mxu0 %v219
    %243 = vmatprep.subr.mxu0 0.0
    %244 = vmatpush1.msra.mxu0 %v220
    %245 = vmatprep.subr.mxu0 0.0
    %246 = vmatpush1.msra.mxu0 %v221
    %247 = vmatprep.subr.mxu0 0.0
    %248 = vmatpush1.msra.mxu0 %v222
    %249 = vmatprep.subr.mxu0 0.0
    %250 = vmatpush1.msra.mxu0 %v223
    %251 = vmatprep.subr.mxu0 0.0
    %252 = vmatpush1.msra.mxu0 %v224
    %253 = vmatprep.subr.mxu0 0.0
    %254 = vmatpush1.msra.mxu0 %v225
    %255 = vmatprep.subr.mxu0 0.0
    %256 = vmatpush1.msra.mxu0 %v226
    %257 = vmatprep.subr.mxu0 0.0
    %258 = vmatpush1.msra.mxu0 %v227
    %259 = vmatprep.subr.mxu0 0.0
    %260 = vmatpush1.msra.mxu0 %v228
    %261 = vmatprep.subr.mxu0 0.0
    %262 = vmatpush1.msra.mxu0 0.0
    %263 = vmatprep.subr.mxu0 0.0
    %264 = vmatpush1.msra.mxu0 0.0
    %265 = vmatprep.subr.mxu0 0.0
    %266 = vmatpush1.msra.mxu0 0.0
    %267 = vmatprep.subr.mxu0 0.0
    %268 = vmatpush1.msra.mxu0 0.0
    %269 = vmatprep.subr.mxu0 0.0
    %270 = vmatpush1.msra.mxu0 0.0
    %271 = vmatprep.subr.mxu0 0.0
    %272 = vmatpush1.msra.mxu0 0.0
    %273 = vmatprep.subr.mxu0 0.0
    %274 = vmatpush1.msra.mxu0 0.0
    %275 = vmatprep.subr.mxu0 0.0
    %276 = vmatpush1.msra.mxu0 0.0
    %277 = vmatprep.subr.mxu0 0.0
    %278 = vmatpush1.msra.mxu0 0.0
    %279 = vmatprep.subr.mxu0 0.0
    %280 = vmatpush1.msra.mxu0 0.0
    %281 = vmatprep.subr.mxu0 0.0
    %282 = vmatpush1.msra.mxu0 0.0
    %283 = vmatprep.subr.mxu0 0.0
    %284 = vmatpush1.msra.mxu0 0.0
    %285 = vmatprep.subr.mxu0 0.0
    %286 = vmatpush1.msra.mxu0 0.0
    %287 = vmatprep.subr.mxu0 0.0
    %288 = vmatpush1.msra.mxu0 0.0
    %289 = vmatprep.subr.mxu0 0.0
    %290 = vmatpush1.msra.mxu0 0.0
    %291 = vmatprep.subr.mxu0 0.0
    %292 = vmatpush1.msra.mxu0 0.0
    %293 = vmatprep.mubr.f32.mxu0 0.0
    %294 = vmatmul.mubr.f32.gmra.mrb[0].mxu0 %v24
    %v295 = vpop.f32.mrb[0].mxu0
    %v296 = vadd.f32 %v210, %v295
    %v297 = vpop.f32.mrb[0].mxu0
    %298 = vdwg.mxu0
    %299 = vst [vmem:[#allocation2] sm:$0xff] %v296
    // Predicated region
    $region26: #{resnet_block_fc.1} parent=1 // pred_check
      _
    $region27: #{resnet_block_fc.1} parent=1 // pred_check_branch
      %301 = sbr.rel (0) target = $region29
    $region28: #{resnet_block_fc.1} parent=1 // pred_region
      %s303 = ssub.s32 128, 128
      %304 = vsyncadd [#allocation3], %s303
      %s306 = sshll.u32 [#allocation2], 4
      %s307 = int_to_ptr.vmem [resolvable:$true] %s306
      %309 = dma.vmem_to_hbm [thread:$0]  %s307, 128, %s6, [#allocation3]
    $region29: #{resnet_block_fc.1} parent=1 // pred_fallthru
      _
    // Predicated region
    $region30: #{resnet_block_fc.1} parent=1 // pred_check
      _
    $region31: #{resnet_block_fc.1} parent=1 // pred_check_branch
      %311 = sbr.rel (0) target = $region33
    $region32: #{resnet_block_fc.1} parent=1 // pred_region
      %312 = dma.done [#allocation3], 128
    $region33: #{resnet_block_fc.1} parent=1 // pred_fallthru
      _
    %313 = vsyncpa [#allocation3], 1

</llo_original>
